<compile_context>
chip_gen: v7x
topology: tpu7x:2x2x1
jax: 0.10.0
libtpu: 0.0.40
codegen_flags: <defaults>
</compile_context>

<pallas_src>
import functools
import math

import jax
import jax.numpy as jnp
from jax import lax
from jax.experimental import pallas as pl
from jax.experimental.pallas import tpu as pltpu


_NEG = -1e30          # large-negative sentinel for the masked max (finite f32)
_FAR = 1.0e6          # coordinate for padded points (far outside any radius)
_BATCH_GROUP = 8      # FPS batch rows per grid step (sublane tile)
_ANCHOR_TILE = 8      # encode anchors per grid step
_POINT_TILE = 512     # encode points per grid step when N is tiled


def _round_up(x, m):
    return ((x + m - 1) // m) * m


# ----------------------------------------------------------------------------
# Kernel 1: farthest point sampling, batched over groups of 8 batch rows.
# ----------------------------------------------------------------------------
def _fps_kernel(pts_ref, out_ref, md_ref, *, num_samples):
    # pts_ref: (3, BG, N) channels-first, N on lanes.
    # out_ref: (num_samples, BG, 3) selected coordinates.
    # md_ref : (BG, N) f32 running min squared distance (VMEM scratch).
    bg, n = md_ref.shape
    lane = lax.broadcasted_iota(jnp.int32, (bg, n), 1)
    md_ref[...] = jnp.full((bg, n), jnp.inf, jnp.float32)

    # TODO(synk): gnn.fps defaults to random_start=True; we deterministically
    # start from index 0 of every batch row.
    sel0 = (pts_ref[0, :, 0:1], pts_ref[1, :, 0:1], pts_ref[2, :, 0:1])

    def body(t, sel):
        sx, sy, sz = sel                                   # (BG, 1) each
        sl = pl.ds(t, 1)
        out_ref[sl, :, 0:1] = sx[None]
        out_ref[sl, :, 1:2] = sy[None]
        out_ref[sl, :, 2:3] = sz[None]

        x = pts_ref[0]
        y = pts_ref[1]
        z = pts_ref[2]
        dx = x - sx
        dy = y - sy
        dz = z - sz
        d2 = dx * dx + dy * dy + dz * dz                   # (BG, N), lane-dense
        md = jnp.minimum(md_ref[...], d2)
        md_ref[...] = md

        # first-argmax per row (deterministic tie-break toward lower index)
        mx = jnp.max(md, axis=1, keepdims=True)            # (BG, 1)
        idx = jnp.min(jnp.where(md >= mx, lane, n), axis=1, keepdims=True)
        hot = lane == idx                                  # (BG, N)
        nsx = jnp.max(jnp.where(hot, x, -jnp.inf), axis=1, keepdims=True)
        nsy = jnp.max(jnp.where(hot, y, -jnp.inf), axis=1, keepdims=True)
        nsz = jnp.max(jnp.where(hot, z, -jnp.inf), axis=1, keepdims=True)
        return (nsx, nsy, nsz)

    lax.fori_loop(0, num_samples, body, sel0)


def fps_pallas(points_cbn, num_samples):
    # points_cbn: (3, B, N) with B % _BATCH_GROUP == 0. Returns (M, B, 3).
    _, b, n = points_cbn.shape
    bg = _BATCH_GROUP
    kern = functools.partial(_fps_kernel, num_samples=num_samples)
    return pl.pallas_call(
        kern,
        out_shape=jax.ShapeDtypeStruct((num_samples, b, 3), jnp.float32),
        grid_spec=pltpu.PrefetchScalarGridSpec(
            num_scalar_prefetch=0,
            grid=(b // bg,),
            in_specs=[pl.BlockSpec((3, bg, n), lambda g: (0, g, 0))],
            out_specs=pl.BlockSpec((num_samples, bg, 3), lambda g: (0, g, 0)),
            scratch_shapes=[pltpu.VMEM((bg, n), jnp.float32)],
        ),
        compiler_params=pltpu.CompilerParams(
            dimension_semantics=("parallel",)),
    )(points_cbn)


# ----------------------------------------------------------------------------
# Kernel 2: radius grouping + shared MLP + masked running-max aggregation.
# ----------------------------------------------------------------------------
def _encode_kernel(pts_ref, anc_ref, w1_ref, b1_ref, w2_ref, b2_ref, out_ref,
                   *, radius_sq):
    # pts_ref: (1, 3, TN) points (channels-first).
    # anc_ref: (1, TM, 3, 1) anchor coordinates.
    # w1_ref : (3, H) first-layer weight with 1/radius folded in.
    # b1_ref : (H, 1) first-layer bias.
    # w2_ref : (H, F) second-layer weight.
    # b2_ref : (1, F) second-layer bias (added at finalize).
    # out_ref: (1, TM, F) running-max accumulator / final features.
    ni = pl.program_id(2)
    n_last = pl.num_programs(2) - 1

    pts = pts_ref[0]                                       # (3, TN)
    anc = anc_ref[0]                                       # (TM, 3, 1)
    tm = anc.shape[0]
    hdim = w1_ref.shape[1]
    fdim = w2_ref.shape[1]

    # relative offsets (p - a): (TM, 3, TN), TN lane-dense.
    rel = pts[None, :, :] - anc
    rx = rel[:, 0:1, :]
    ry = rel[:, 1:2, :]
    rz = rel[:, 2:3, :]
    d2 = rx * rx + ry * ry + rz * rz                       # (TM, 1, TN)
    inb = d2 <= radius_sq                                  # (TM, 1, TN)
    # TODO(synk): gnn.radius defaults to max_num_neighbors=32 (arbitrary
    # truncation); here every point inside the radius contributes.

    # Shared MLP: Linear(3, H) + ReLU + Linear(H, F), batched over anchors.
    w1b = jnp.broadcast_to(w1_ref[...][None], (tm, 3, hdim))
    w2b = jnp.broadcast_to(w2_ref[...][None], (tm, hdim, fdim))
    dnums = (((1,), (1,)), ((0,), (0,)))
    h = lax.dot_general(w1b, rel, dnums,
                        preferred_element_type=jnp.float32)      # (TM, H, TN)
    h = jnp.maximum(h + b1_ref[...][None, :, :], 0.0)
    feat = lax.dot_general(w2b, h, dnums,
                           preferred_element_type=jnp.float32)   # (TM, F, TN)

    # radius mask + max pool over this point tile
    feat = jnp.where(inb, feat, _NEG)
    tile_max = jnp.max(feat, axis=2)                       # (TM, F)

    @pl.when(ni == 0)
    def _init():
        out_ref[...] = jnp.full(out_ref.shape, _NEG, out_ref.dtype)

    out_ref[0] = jnp.maximum(out_ref[0], tile_max)

    @pl.when(ni == n_last)
    def _finalize():
        out_ref[0] = out_ref[0] + b2_ref[...]


def encode_pallas(points_cf, anchors4, w1s, b1c, w2, b2r, radius,
                  anchor_tile, point_tile):
    b, _, n_pad = points_cf.shape
    m_pad = anchors4.shape[1]
    hdim = w1s.shape[1]
    fdim = w2.shape[1]
    kern = functools.partial(_encode_kernel, radius_sq=float(radius) ** 2)
    grid = (b, m_pad // anchor_tile, n_pad // point_tile)
    return pl.pallas_call(
        kern,
        out_shape=jax.ShapeDtypeStruct((b, m_pad, fdim), jnp.float32),
        grid_spec=pltpu.PrefetchScalarGridSpec(
            num_scalar_prefetch=0,
            grid=grid,
            in_specs=[
                pl.BlockSpec((1, 3, point_tile),
                             lambda bi, mi, ni: (bi, 0, ni)),
                pl.BlockSpec((1, anchor_tile, 3, 1),
                             lambda bi, mi, ni: (bi, mi, 0, 0)),
                pl.BlockSpec((3, hdim), lambda bi, mi, ni: (0, 0)),
                pl.BlockSpec((hdim, 1), lambda bi, mi, ni: (0, 0)),
                pl.BlockSpec((hdim, fdim), lambda bi, mi, ni: (0, 0)),
                pl.BlockSpec((1, fdim), lambda bi, mi, ni: (0, 0)),
            ],
            out_specs=pl.BlockSpec((1, anchor_tile, fdim),
                                   lambda bi, mi, ni: (bi, mi, 0)),
        ),
        compiler_params=pltpu.CompilerParams(
            dimension_semantics=("parallel", "parallel", "arbitrary")),
    )(points_cf, anchors4, w1s, b1c, w2, b2r)


# ----------------------------------------------------------------------------
# Module wrapper (mirrors OutsideEncoder.forward semantics).
# ----------------------------------------------------------------------------
class OutsideEncoder:
    """PointNet-style neighborhood encoder: Linear(3,H) + ReLU + Linear(H,F),
    then max aggregation over each radius cluster around FPS anchors."""

    def __init__(self, nb_neighbors, radius, hidden_dim=32, feature_dim=64,
                 point_tile=None, key=None):
        self.nb_neighbors = nb_neighbors
        self.radius = float(radius)
        self.hidden_dim = hidden_dim
        self.feature_dim = feature_dim
        self.point_tile = point_tile
        if key is None:
            key = jax.random.PRNGKey(0)
        k1, k2, k3, k4 = jax.random.split(key, 4)
        lim1 = 1.0 / math.sqrt(3.0)
        lim2 = 1.0 / math.sqrt(hidden_dim)
        self.w1 = jax.random.uniform(k1, (3, hidden_dim), jnp.float32, -lim1, lim1)
        self.b1 = jax.random.uniform(k2, (hidden_dim,), jnp.float32, -lim1, lim1)
        self.w2 = jax.random.uniform(k3, (hidden_dim, feature_dim), jnp.float32,
                                     -lim2, lim2)
        self.b2 = jax.random.uniform(k4, (feature_dim,), jnp.float32, -lim2, lim2)

    def __call__(self, points, batch, num_graphs=None):
        points = jnp.asarray(points, jnp.float32)
        batch = jnp.asarray(batch)
        if num_graphs is None:
            # TODO(synk): host sync; pass num_graphs explicitly to stay traceable.
            num_graphs = int(batch.max()) + 1
        total = points.shape[0]
        assert total % num_graphs == 0, \
            "dense layout requires an equal number of points per graph"
        # TODO(synk): ragged graphs (unequal counts / unsorted batch vector)
        # are not supported by this dense layout.
        n = total // num_graphs
        points_dense = points.reshape(num_graphs, n, 3)

        num_samples = int(math.ceil(n / self.nb_neighbors))   # ratio = 1/nb

        # ---- farthest point sampling (batched, channels-first) -------------
        pts_cbn = jnp.transpose(points_dense, (2, 0, 1))       # (3, B, N)
        b_pad = _round_up(num_graphs, _BATCH_GROUP)
        if b_pad > num_graphs:
            pts_cbn = jnp.pad(pts_cbn, ((0, 0), (0, b_pad - num_graphs), (0, 0)))
        fps_mb3 = fps_pallas(pts_cbn, num_samples)              # (M, Bp, 3)
        fps_dense = jnp.transpose(fps_mb3[:, :num_graphs, :], (1, 0, 2))  # (B,M,3)

        # ---- radius grouping + neighborhood encoder (tiled) ----------------
        tm = _ANCHOR_TILE
        m_pad = _round_up(num_samples, tm)
        anchors = fps_dense
        if m_pad > num_samples:
            anchors = jnp.pad(anchors, ((0, 0), (0, m_pad - num_samples), (0, 0)),
                              mode="edge")
        anchors4 = anchors[..., None]                           # (B, Mp, 3, 1)

        tn = self.point_tile or (_POINT_TILE if n > _POINT_TILE else n)
        if tn >= n:
            tn = n
        else:
            tn = _round_up(tn, 128)       # lane-tile legality when N is tiled
        n_pad = _round_up(n, tn)
        pts_bcn = jnp.transpose(points_dense, (0, 2, 1))        # (B, 3, N)
        if n_pad > n:
            pts_bcn = jnp.pad(pts_bcn, ((0, 0), (0, 0), (0, n_pad - n)),
                              constant_values=_FAR)

        w1s = self.w1 / self.radius        # fold 1/radius into the first layer
        feats = encode_pallas(pts_bcn, anchors4, w1s, self.b1[:, None],
                              self.w2, self.b2[None, :], self.radius, tm, tn)
        feats = feats[:, :num_samples, :]                       # (B, M, F)

        fps_points = fps_dense.reshape(num_graphs * num_samples, 3)
        features = feats.reshape(num_graphs * num_samples, self.feature_dim)
        fps_batch = jnp.repeat(
            jnp.arange(num_graphs, dtype=batch.dtype), num_samples)
        return fps_points, features, fps_batch


# ----------------------------------------------------------------------------
# Pure-JAX reference (mirrors the kernel semantics) for correctness checks.
# ----------------------------------------------------------------------------
def _reference_forward(points_dense, w1, b1, w2, b2, radius, num_samples):
    _, n, _ = points_dense.shape
    idx_range = jnp.arange(n, dtype=jnp.int32)
    w1s = w1 / radius

    def fps_one(pts):
        x, y, z = pts[:, 0], pts[:, 1], pts[:, 2]

        def body(t, state):
            md, sel, out = state
            sx, sy, sz = sel
            out = out.at[t, 0].set(sx)
            out = out.at[t, 1].set(sy)
            out = out.at[t, 2].set(sz)
            dx = x - sx
            dy = y - sy
            dz = z - sz
            d2 = dx * dx + dy * dy + dz * dz
            md = jnp.minimum(md, d2)
            mx = jnp.max(md)
            nxt = jnp.min(jnp.where(md >= mx, idx_range, n))
            return (md, (x[nxt], y[nxt], z[nxt]), out)

        state0 = (jnp.full((n,), jnp.inf, jnp.float32),
                  (x[0], y[0], z[0]),
                  jnp.zeros((num_samples, 3), jnp.float32))
        _, _, out = lax.fori_loop(0, num_samples, body, state0)
        return out

    fps_pts = jax.vmap(fps_one)(points_dense)                   # (B, M, 3)

    def enc_one(pts, anchors):
        diff = pts[None, :, :] - anchors[:, None, :]             # (M, N, 3)
        d2 = diff[..., 0] ** 2 + diff[..., 1] ** 2 + diff[..., 2] ** 2
        hh = jnp.maximum(jnp.einsum("mnc,ch->mnh", diff, w1s) + b1, 0.0)
        ff = jnp.einsum("mnh,hf->mnf", hh, w2)
        ff = jnp.where((d2 <= radius * radius)[:, :, None], ff, -jnp.inf)
        return jnp.max(ff, axis=1) + b2

    feats = jax.vmap(enc_one)(points_dense, fps_pts)             # (B, M, F)
    return fps_pts, feats


def _run_case(enc, key, num_graphs, n):
    pts = jax.random.uniform(key, (num_graphs * n, 3), jnp.float32)
    batch = jnp.repeat(jnp.arange(num_graphs, dtype=jnp.int32), n)
    fps_points, features, fps_batch = enc(pts, batch, num_graphs=num_graphs)
    jax.block_until_ready((fps_points, features, fps_batch))

    m = int(math.ceil(n / enc.nb_neighbors))
    assert fps_points.shape == (num_graphs * m, 3)
    assert features.shape == (num_graphs * m, enc.feature_dim)
    assert fps_batch.shape == (num_graphs * m,)
    assert bool(jnp.all(jnp.isfinite(features)))

    ref_fps, ref_feats = _reference_forward(
        pts.reshape(num_graphs, n, 3), enc.w1, enc.b1, enc.w2, enc.b2,
        enc.radius, m)
    assert bool(jnp.allclose(fps_points, ref_fps.reshape(num_graphs * m, 3),
                             rtol=1e-5, atol=1e-5)), "FPS mismatch"
    assert bool(jnp.allclose(features, ref_feats.reshape(num_graphs * m, -1),
                             rtol=5e-3, atol=5e-3)), "feature mismatch"


if __name__ == "__main__":
    jax.config.update("jax_default_matmul_precision", "highest")

    key = jax.random.PRNGKey(0)
    k_params, k_a, k_b = jax.random.split(key, 3)

    # Case 1: small shapes, single point tile.
    enc = OutsideEncoder(nb_neighbors=4, radius=0.5, hidden_dim=32,
                         feature_dim=64, key=k_params)
    _run_case(enc, k_a, num_graphs=2, n=64)

    # Case 2: exercises batch padding (3 -> 8), anchor padding (63 -> 64),
    # point padding (250 -> 256) and multi-tile running-max accumulation.
    enc2 = OutsideEncoder(nb_neighbors=4, radius=0.3, hidden_dim=32,
                          feature_dim=64, point_tile=128, key=k_params)
    _run_case(enc2, k_b, num_graphs=3, n=250)

    print("KERNEL_OK")
</pallas_src>

<mosaic_0001>
module attributes {stable_mosaic.version = 11 : i64} {
  func.func @_fps_kernel(%arg0: i32, %arg1: memref<3x8x64xf32, #tpu.memory_space<vmem>>, %arg2: memref<16x8x3xf32, #tpu.memory_space<vmem>>, %arg3: memref<8x64xf32, #tpu.memory_space<vmem>>) attributes {dimension_semantics = [#tpu.dimension_semantics<parallel>], iteration_bounds = array<i64: 1>, scalar_prefetch = 0 : i64, scratch_operands = 1 : i64, tpu.core_type = #tpu.core_type<tc>, window_params = [{transform_indices = @transform_0, window_bounds = array<i64: 3, 8, 64>}, {transform_indices = @transform_1, window_bounds = array<i64: 16, 8, 3>}]} {
    %0 = tpu.iota {dimensions = array<i32: 1>} : vector<8x64xi32>
    %cst = arith.constant 0x7F800000 : f32
    %1 = vector.broadcast %cst : f32 to vector<8x64xf32>
    %c0 = arith.constant 0 : index
    %c0_0 = arith.constant 0 : index
    %2 = vector.load %arg3[%c0, %c0_0] : memref<8x64xf32, #tpu.memory_space<vmem>>, vector<8x64xf32>
    tpu.vector_store %arg3[%c0, %c0_0], %1 {strides = array<i32>} : memref<8x64xf32, #tpu.memory_space<vmem>>, vector<8x64xf32>,
    %c0_1 = arith.constant 0 : index
    %c0_2 = arith.constant 0 : index
    %c0_3 = arith.constant 0 : index
    %3 = vector.load %arg1[%c0_1, %c0_2, %c0_3] : memref<3x8x64xf32, #tpu.memory_space<vmem>>, vector<1x8x1xf32>
    %4 = vector.shape_cast %3 : vector<1x8x1xf32> to vector<8x1xf32>
    %c1 = arith.constant 1 : index
    %c0_4 = arith.constant 0 : index
    %c0_5 = arith.constant 0 : index
    %5 = vector.load %arg1[%c1, %c0_4, %c0_5] : memref<3x8x64xf32, #tpu.memory_space<vmem>>, vector<1x8x1xf32>
    %6 = vector.shape_cast %5 : vector<1x8x1xf32> to vector<8x1xf32>
    %c2 = arith.constant 2 : index
    %c0_6 = arith.constant 0 : index
    %c0_7 = arith.constant 0 : index
    %7 = vector.load %arg1[%c2, %c0_6, %c0_7] : memref<3x8x64xf32, #tpu.memory_space<vmem>>, vector<1x8x1xf32>
    %8 = vector.shape_cast %7 : vector<1x8x1xf32> to vector<8x1xf32>
    %c0_i32 = arith.constant 0 : i32
    %c16_i32 = arith.constant 16 : i32
    %9 = arith.addi %c0_i32, %c16_i32 : i32
    %c1_i32 = arith.constant 1 : i32
    %10:3 = scf.for %arg4 = %c0_i32 to %9 step %c1_i32 iter_args(%arg5 = %4, %arg6 = %6, %arg7 = %8) -> (vector<8x1xf32>, vector<8x1xf32>, vector<8x1xf32>)  : i32 {
      %11 = vector.shape_cast %arg5 : vector<8x1xf32> to vector<1x8x1xf32>
      %12 = arith.index_cast %arg4 : i32 to index
      %c0_9 = arith.constant 0 : index
      %c0_10 = arith.constant 0 : index
      %13 = vector.load %arg2[%12, %c0_9, %c0_10] : memref<16x8x3xf32, #tpu.memory_space<vmem>>, vector<1x8x1xf32>
      tpu.vector_store %arg2[%12, %c0_9, %c0_10], %11 {strides = array<i32>} : memref<16x8x3xf32, #tpu.memory_space<vmem>>, vector<1x8x1xf32>,
      %14 = vector.shape_cast %arg6 : vector<8x1xf32> to vector<1x8x1xf32>
      %15 = arith.index_cast %arg4 : i32 to index
      %c0_11 = arith.constant 0 : index
      %c1_12 = arith.constant 1 : index
      %16 = vector.load %arg2[%15, %c0_11, %c1_12] : memref<16x8x3xf32, #tpu.memory_space<vmem>>, vector<1x8x1xf32>
      tpu.vector_store %arg2[%15, %c0_11, %c1_12], %14 {strides = array<i32>} : memref<16x8x3xf32, #tpu.memory_space<vmem>>, vector<1x8x1xf32>,
      %17 = vector.shape_cast %arg7 : vector<8x1xf32> to vector<1x8x1xf32>
      %18 = arith.index_cast %arg4 : i32 to index
      %c0_13 = arith.constant 0 : index
      %c2_14 = arith.constant 2 : index
      %19 = vector.load %arg2[%18, %c0_13, %c2_14] : memref<16x8x3xf32, #tpu.memory_space<vmem>>, vector<1x8x1xf32>
      tpu.vector_store %arg2[%18, %c0_13, %c2_14], %17 {strides = array<i32>} : memref<16x8x3xf32, #tpu.memory_space<vmem>>, vector<1x8x1xf32>,
      %c0_15 = arith.constant 0 : index
      %c0_16 = arith.constant 0 : index
      %c0_17 = arith.constant 0 : index
      %20 = vector.load %arg1[%c0_15, %c0_16, %c0_17] : memref<3x8x64xf32, #tpu.memory_space<vmem>>, vector<1x8x64xf32>
      %21 = vector.shape_cast %20 : vector<1x8x64xf32> to vector<8x64xf32>
      %c1_18 = arith.constant 1 : index
      %c0_19 = arith.constant 0 : index
      %c0_20 = arith.constant 0 : index
      %22 = vector.load %arg1[%c1_18, %c0_19, %c0_20] : memref<3x8x64xf32, #tpu.memory_space<vmem>>, vector<1x8x64xf32>
      %23 = vector.shape_cast %22 : vector<1x8x64xf32> to vector<8x64xf32>
      %c2_21 = arith.constant 2 : index
      %c0_22 = arith.constant 0 : index
      %c0_23 = arith.constant 0 : index
      %24 = vector.load %arg1[%c2_21, %c0_22, %c0_23] : memref<3x8x64xf32, #tpu.memory_space<vmem>>, vector<1x8x64xf32>
      %25 = vector.shape_cast %24 : vector<1x8x64xf32> to vector<8x64xf32>
      %26 = vector.broadcast %arg5 : vector<8x1xf32> to vector<8x64xf32>
      %27 = arith.subf %21, %26 : vector<8x64xf32>
      %28 = vector.broadcast %arg6 : vector<8x1xf32> to vector<8x64xf32>
      %29 = arith.subf %23, %28 : vector<8x64xf32>
      %30 = vector.broadcast %arg7 : vector<8x1xf32> to vector<8x64xf32>
      %31 = arith.subf %25, %30 : vector<8x64xf32>
      %32 = arith.mulf %27, %27 : vector<8x64xf32>
      %33 = arith.mulf %29, %29 : vector<8x64xf32>
      %34 = arith.addf %32, %33 : vector<8x64xf32>
      %35 = arith.mulf %31, %31 : vector<8x64xf32>
      %36 = arith.addf %34, %35 : vector<8x64xf32>
      %c0_24 = arith.constant 0 : index
      %c0_25 = arith.constant 0 : index
      %37 = vector.load %arg3[%c0_24, %c0_25] : memref<8x64xf32, #tpu.memory_space<vmem>>, vector<8x64xf32>
      %38 = arith.minimumf %37, %36 : vector<8x64xf32>
      %c0_26 = arith.constant 0 : index
      %c0_27 = arith.constant 0 : index
      %39 = vector.load %arg3[%c0_26, %c0_27] : memref<8x64xf32, #tpu.memory_space<vmem>>, vector<8x64xf32>
      tpu.vector_store %arg3[%c0_26, %c0_27], %38 {strides = array<i32>} : memref<8x64xf32, #tpu.memory_space<vmem>>, vector<8x64xf32>,
      %cst_28 = arith.constant dense<0xFF800000> : vector<8xf32>
      %40 = vector.multi_reduction <maximumf>, %38, %cst_28 [1] : vector<8x64xf32> to vector<8xf32>
      %41 = vector.shape_cast %40 : vector<8xf32> to vector<8x1xf32>
      %42 = vector.broadcast %41 : vector<8x1xf32> to vector<8x64xf32>
      %43 = arith.cmpf oge, %38, %42 : vector<8x64xf32>
      %c64_i32 = arith.constant 64 : i32
      %44 = vector.broadcast %c64_i32 : i32 to vector<8x64xi32>
      %45 = arith.select %43, %0, %44 : vector<8x64xi1>, vector<8x64xi32>
      %cst_29 = arith.constant dense<2147483647> : vector<8xi32>
      %46 = vector.multi_reduction <minsi>, %45, %cst_29 [1] : vector<8x64xi32> to vector<8xi32>
      %47 = vector.shape_cast %46 : vector<8xi32> to vector<8x1xi32>
      %48 = vector.broadcast %47 : vector<8x1xi32> to vector<8x64xi32>
      %49 = arith.cmpi eq, %0, %48 : vector<8x64xi32>
      %cst_30 = arith.constant 0xFF800000 : f32
      %50 = vector.broadcast %cst_30 : f32 to vector<8x64xf32>
      %51 = arith.select %49, %21, %50 : vector<8x64xi1>, vector<8x64xf32>
      %cst_31 = arith.constant dense<0xFF800000> : vector<8xf32>
      %52 = vector.multi_reduction <maximumf>, %51, %cst_31 [1] : vector<8x64xf32> to vector<8xf32>
      %53 = vector.shape_cast %52 : vector<8xf32> to vector<8x1xf32>
      %cst_32 = arith.constant 0xFF800000 : f32
      %54 = vector.broadcast %cst_32 : f32 to vector<8x64xf32>
      %55 = arith.select %49, %23, %54 : vector<8x64xi1>, vector<8x64xf32>
      %cst_33 = arith.constant dense<0xFF800000> : vector<8xf32>
      %56 = vector.multi_reduction <maximumf>, %55, %cst_33 [1] : vector<8x64xf32> to vector<8xf32>
      %57 = vector.shape_cast %56 : vector<8xf32> to vector<8x1xf32>
      %cst_34 = arith.constant 0xFF800000 : f32
      %58 = vector.broadcast %cst_34 : f32 to vector<8x64xf32>
      %59 = arith.select %49, %25, %58 : vector<8x64xi1>, vector<8x64xf32>
      %cst_35 = arith.constant dense<0xFF800000> : vector<8xf32>
      %60 = vector.multi_reduction <maximumf>, %59, %cst_35 [1] : vector<8x64xf32> to vector<8xf32>
      %61 = vector.shape_cast %60 : vector<8xf32> to vector<8x1xf32>
      scf.yield %53, %57, %61 : vector<8x1xf32>, vector<8x1xf32>, vector<8x1xf32>
    }
    %c16_i32_8 = arith.constant 16 : i32
    return
  }
  func.func @transform_0(%arg0: i32) -> (i32, i32, i32) {
    %c0_i32 = arith.constant 0 : i32
    %c0_i32_0 = arith.constant 0 : i32
    %c0_i32_1 = arith.constant 0 : i32
    return %c0_i32, %arg0, %c0_i32_0 : i32, i32, i32
  }
  func.func @transform_1(%arg0: i32) -> (i32, i32, i32) {
    %c0_i32 = arith.constant 0 : i32
    %c0_i32_0 = arith.constant 0 : i32
    %c0_i32_1 = arith.constant 0 : i32
    return %c0_i32, %arg0, %c0_i32_0 : i32, i32, i32
  }
}

</mosaic_0001>

<llo_original>
// kernel: tpu_custom_call.1
$region0: #{tpu_custom_call.1}
  #allocation0 [shape = 'u32[]', space=smem, size = 0x4, offset = 0x4, fixed_abs, tag = 'smem constant byte address 0x4 - core index']
  #allocation1 [shape = 'u32[144,128]{1,0:T(1,128)}', space=vmem, size = 0x12000, scoped, tag = 'internal scratch']
  #allocation2 [shape = 'f32[8,64]{1,0:T(8,128)}', space=vmem, size = 0x1000, scoped, tag = 'scratch operand']
  %s0 = inlined_call_operand.hbm [shape: f32[3,8,64], index: 0, kind: input, shape index: {}]
  %s1 = inlined_call_operand.vmem [shape: f32[16,8,3], index: 1, kind: output, shape index: {}]
  %s2 = sld [smem:[#allocation0]]
  $region25: #{tpu_custom_call.1} parent=0
    _
  %s4 = ssub.s32 1, %s2
  %s5 = scalar_select 0, %s4, %s2
  $region1: #{tpu_custom_call.1} parent=0
    #allocation3 [shape = 'u8[12288]{0}', space=vmem, size = 0x3000, scoped, tag = 'input window, operand 0, single buffered']
    #allocation4 [shape = 's32[1]{0}', space=sflag, size = 0x4, scoped, tag = 'scoped memory for tpu_custom_call.1']
    %6 = vsyncpa [#allocation4], 0
    // Predicated region
    $region2: #{tpu_custom_call.1} parent=1 // pred_check
      _
    $region3: #{tpu_custom_call.1} parent=1 // pred_check_branch
      %8 = sbr.rel (0) target = $region5
    $region4: #{tpu_custom_call.1} parent=1 // pred_region
      %s10 = ssub.s32 384, 384
      %11 = vsyncadd [#allocation4], %s10
      %s12 = sshll.u32 [#allocation3], 4
      %s13 = int_to_ptr.vmem [resolvable:$true] %s12
      %18 = dma.hbm_to_vmem [thread:$0]  %s0, 384, %s13, [#allocation4], 128, 128, 8
    $region5: #{tpu_custom_call.1} parent=1 // pred_fallthru
      _
    // Predicated region
    $region6: #{tpu_custom_call.1} parent=1 // pred_check
      _
    $region7: #{tpu_custom_call.1} parent=1 // pred_check_branch
      %20 = sbr.rel (0) target = $region9
    $region8: #{tpu_custom_call.1} parent=1 // pred_region
      %21 = dma.done [#allocation4], 384
    $region9: #{tpu_custom_call.1} parent=1 // pred_fallthru
      _
    %v22 = vlaneseq
    %v23 = vand.u32 %v22, 127
    %vm24 = vcmask 523264
    %25 = vst.msk [vmem:[#allocation2] sm:$0xff] %vm24, inf
    %v26 = vld [vmem:[#allocation3] sm:$0xff]
    %s27 = scalar_lea.vmem [#allocation3], 8
    %v28 = vld [vmem:[%s27] sm:$0xff]
    %s29 = scalar_lea.vmem [#allocation3], 16
    %v30 = vld [vmem:[%s29] sm:$0xff]
    loop: start=0, step=1, limit=16
    $region10: #{tpu_custom_call.1} parent=1 // loop_pre_header
      _
    $region11: #{tpu_custom_call.1} parent=1 // loop_header
      %s32 = sphi 0, %s36
      %p33 = scmp.ge.s32.totalorder %s32, 16
      %v37 = vphi %v26, %v107
      %v38 = vphi %v28, %v111
      %v39 = vphi %v30, %v115
    $region12: #{tpu_custom_call.1} parent=1 // loop_header_branch
      %35 = sbr.rel (%p33) target = $region16
    $region13: #{tpu_custom_call.1} parent=1 // loop_body
      %s40 = smul.u32 %s32, 8
      %s41 = scalar_lea.vmem %s1, %s40
      %vm42 = vcmask 7168
      %43 = vst.msk [vmem:[%s41] sm:$0xff] %vm42, %v37
      %45 = vrot.lane.b32.xlu0 %v38, 1
      %v46 = vpop.permute.xlu0 %45
      %vm48 = vcmask 15368
      %49 = vst.msk [vmem:[%s41] sm:$0xff] %vm48, %v46
      %51 = vrot.lane.b32.xlu0 %v39, 2
      %v52 = vpop.permute.xlu0 %51
      %vm54 = vcmask 23568
      %55 = vst.msk [vmem:[%s41] sm:$0xff] %vm54, %v52
      %v56 = vld [vmem:[#allocation3] sm:$0xff]
      %v57 = vld [vmem:[%s27] sm:$0xff]
      %v58 = vld [vmem:[%s29] sm:$0xff]
      %60 = vset.pattern.permute.xlu0 0
      %61 = vperm.xlu0 %60, %v37
      %v62 = vpop.permute.xlu0 %61
      %v64 = vsub.f32 %v56, %v62
      %65 = vset.pattern.permute.xlu0 0
      %66 = vperm.xlu0 %65, %v38
      %v67 = vpop.permute.xlu0 %66
      %v69 = vsub.f32 %v57, %v67
      %70 = vset.pattern.permute.xlu0 0
      %71 = vperm.xlu0 %70, %v39
      %v72 = vpop.permute.xlu0 %71
      %v74 = vsub.f32 %v58, %v72
      %v75 = vmul.f32 %v64, %v64
      %v76 = vmul.f32 %v69, %v69
      %v77 = vadd.f32 %v75, %v76
      %v78 = vmul.f32 %v74, %v74
      %v79 = vadd.f32 %v77, %v78
      %v80 = vld [vmem:[#allocation2] sm:$0xff]
      %v81 = vmin.f32 %v80, %v79
      %82 = vst.msk [vmem:[#allocation2] sm:$0xff] %vm24, %v81
      %v83 = vsel %vm24, %v81, -inf
      %84 = vmax.xlane.f32.xlu0 %v83
      %v85 = vpop.xlane.xlu0 %84
      %vm86 = vcmp.ge.f32.partialorder %v81, %v85
      %v87 = vsel %vm86, %v23, 64
      %v88 = vsel %vm24, %v87, 2147483647
      %v89 = vand.u32 %v88, 65535
      %v90 = vshra.s32 %v88, 16
      %v91 = vcvt.s32.f32 %v89
      %v92 = vcvt.s32.f32 %v90
      %93 = vmin.xlane.f32.xlu0 %v92
      %v94 = vpop.xlane.xlu0 %93
      %vm95 = vcmp.eq.f32.partialorder %v92, %v94
      %v96 = vsel %vm95, %v91, inf
      %97 = vmin.xlane.f32.xlu0 %v96
      %v98 = vpop.xlane.xlu0 %97
      %v99 = vcvt.f32.s32 %v98
      %v100 = vcvt.f32.s32 %v94
      %v101 = vshll.u32 %v100, 16
      %v102 = vadd.s32 %v101, %v99
      %vm103 = vcmp.eq.s32.totalorder %v23, %v102
      %v104 = vsel %vm103, %v56, -inf
      %v105 = vsel %vm24, %v104, -inf
      %106 = vmax.xlane.f32.xlu0 %v105
      %v107 = vpop.xlane.xlu0 %106
      %v108 = vsel %vm103, %v57, -inf
      %v109 = vsel %vm24, %v108, -inf
      %110 = vmax.xlane.f32.xlu0 %v109
      %v111 = vpop.xlane.xlu0 %110
      %v112 = vsel %vm103, %v58, -inf
      %v113 = vsel %vm24, %v112, -inf
      %114 = vmax.xlane.f32.xlu0 %v113
      %v115 = vpop.xlane.xlu0 %114
    $region14: #{tpu_custom_call.1} parent=1 // loop_footer
      %s36 = sadd.s32 1, %s32
    $region15: #{tpu_custom_call.1} parent=1 // loop_footer_branch
      %31 = sbr.rel target = $region11
    $region16: #{tpu_custom_call.1} parent=1 // loop_exit
      _
    // Predicated region
    $region17: #{tpu_custom_call.1} parent=1 // pred_check
      _
    $region18: #{tpu_custom_call.1} parent=1 // pred_check_branch
      %117 = sbr.rel (0) target = $region20
    $region19: #{tpu_custom_call.1} parent=1 // pred_region
      _
    $region20: #{tpu_custom_call.1} parent=1 // pred_fallthru
      _
    // Predicated region
    $region21: #{tpu_custom_call.1} parent=1 // pred_check
      _
    $region22: #{tpu_custom_call.1} parent=1 // pred_check_branch
      %119 = sbr.rel (0) target = $region24
    $region23: #{tpu_custom_call.1} parent=1 // pred_region
      _
    $region24: #{tpu_custom_call.1} parent=1 // pred_fallthru
      _
    %120 = vsyncpa [#allocation4], 1

</llo_original>
